<compile_context>
chip_gen: v7x
topology: tpu7x:2x2x1
jax: 0.10.0
libtpu: 0.0.40
codegen_flags: <defaults>
</compile_context>

<pallas_src>
import jax
import jax.numpy as jnp
import numpy as np
from jax.experimental import pallas as pl
from jax.experimental.pallas import tpu as pltpu


def _round_up(v, m):
    return ((v + m - 1) // m) * m


# ----------------------------- Pallas kernel --------------------------------
def _edge_mlp_kernel(flag_ref, x_ref, w1_ref, w2_ref, o_ref):
    # flag_ref (SMEM scalar prefetch) is consumed only by the weight index_maps so
    # that just ONE branch's weights are DMA'd; nothing to do with it in the body.
    del flag_ref
    x = x_ref[...]                                       # (TILE_M, K1P), bias-1 col at num_in
    w1 = w1_ref[0]                                       # (K1P, K2P), bias row + carrier fused
    h = jnp.maximum(jnp.dot(x, w1, preferred_element_type=jnp.float32), 0.0)
    w2 = w2_ref[0]                                       # (K2P, OP), bias row fused via carrier
    y = jnp.maximum(jnp.dot(h, w2, preferred_element_type=jnp.float32), 0.0)
    o_ref[...] = y.astype(o_ref.dtype)


# --------------------------- module-level wrapper ----------------------------
class PallasEdgeModel:
    """JAX/Pallas port of the PyTorch `Model` (graph-net edge MLP)."""

    MAX_TILE_M = 256  # row-tile cap for batched calls (fills v6e/v7x 256-wide MXU)

    def __init__(self, node_features_count, edge_features_count, key):
        self.n = node_features_count
        self.e = edge_features_count
        num_in = 2 * (node_features_count + 2) + edge_features_count + 1
        num_out = 2 * node_features_count + edge_features_count
        self.num_in, self.num_out = num_in, num_out

        # padded dims:
        #   K1P = layer-1 contraction (sublane-aligned, +1 for the bias column)
        #   K2P = hidden width (sublane-aligned, +1 for the bias carrier) -- also
        #         layer-2 contraction, kept at 32 instead of 128 (4x less W2 DMA)
        #   OP  = output lane dim (lane-dense, multiple of 128)
        self.K1P = _round_up(num_in + 1, 8)
        self.K2P = _round_up(num_in + 1, 8)
        self.OP = _round_up(num_out, 128)

        ks = jax.random.split(key, 4)
        # weights ~ N(0, 0.1), biases zero (matches the PyTorch init); stored (in, out).
        self.params_same = (
            0.1 * jax.random.normal(ks[0], (num_in, num_in), jnp.float32),
            jnp.zeros((num_in,), jnp.float32),
            0.1 * jax.random.normal(ks[1], (num_in, num_out), jnp.float32),
            jnp.zeros((num_out,), jnp.float32),
        )
        self.params_diff = (
            0.1 * jax.random.normal(ks[2], (num_in, num_in), jnp.float32),
            jnp.zeros((num_in,), jnp.float32),
            0.1 * jax.random.normal(ks[3], (num_in, num_out), jnp.float32),
            jnp.zeros((num_out,), jnp.float32),
        )

        # One-time padding + bias fusion + branch stacking (index 0 = diff, 1 = same).
        w1_diff, w2_diff = self._augment_branch(*self.params_diff)
        w1_same, w2_same = self._augment_branch(*self.params_same)
        self.w1_stacked = jnp.stack([w1_diff, w1_same], axis=0)   # (2, K1P, K2P)
        self.w2_stacked = jnp.stack([w2_diff, w2_same], axis=0)   # (2, K2P, OP)

        K1P, K2P, OP = self.K1P, self.K2P, self.OP
        n = self.n
        max_tile = PallasEdgeModel.MAX_TILE_M

        def _impl(w1s, w2s, a_data, a_material, a_influx,
                  b_data, b_material, b_influx, e_data, transport_cost, a_is_dst):
            # Batched forward: every per-edge array has a leading E axis.
            E = a_data.shape[0]
            tile_m = min(_round_up(max(E, 1), 8), max_tile)
            e_pad = _round_up(E, tile_m)

            # concatenation order matches the PyTorch forward exactly, plus a
            # trailing constant-1 column that activates the fused bias row.
            feats = jnp.concatenate([
                jnp.reshape(transport_cost, (E, 1)),
                jnp.reshape(a_data, (E, -1)),
                jnp.reshape(a_material, (E, 1)),
                jnp.reshape(a_influx, (E, 1)),
                jnp.reshape(b_data, (E, -1)),
                jnp.reshape(b_material, (E, 1)),
                jnp.reshape(b_influx, (E, 1)),
                jnp.reshape(e_data, (E, -1)),
                jnp.ones((E, 1), jnp.float32),
            ], axis=1).astype(jnp.float32)
            x_p = jnp.zeros((e_pad, K1P), jnp.float32).at[:E, :num_in + 1].set(feats)

            # a_is_dst is STATIC -> the flag is a compile-time constant (no H2D).
            flag = jnp.full((1,), 1 if a_is_dst else 0, jnp.int32)

            y = pl.pallas_call(
                _edge_mlp_kernel,
                out_shape=jax.ShapeDtypeStruct((e_pad, OP), jnp.float32),
                grid_spec=pltpu.PrefetchScalarGridSpec(
                    num_scalar_prefetch=1,
                    grid=(e_pad // tile_m,),
                    in_specs=[
                        # x streams per row tile
                        pl.BlockSpec((tile_m, K1P), lambda i, flag: (i, 0)),
                        # branch selection via scalar-prefetch flag; constant block
                        # index across the grid -> weights stay VMEM-resident.
                        pl.BlockSpec((1, K1P, K2P), lambda i, flag: (flag[0], 0, 0)),
                        pl.BlockSpec((1, K2P, OP), lambda i, flag: (flag[0], 0, 0)),
                    ],
                    out_specs=pl.BlockSpec((tile_m, OP), lambda i, flag: (i, 0)),
                ),
                compiler_params=pltpu.CompilerParams(
                    dimension_semantics=("parallel",)),  # shards rows across TCs on v7x
            )(flag, x_p, w1s, w2s)

            y = y[:E, :num_out]
            # PyTorch split: b = y[:n], a = y[n:2n], e = y[2n:]; return (a, b, e)
            return y[:, n:2 * n], y[:, 0:n], y[:, 2 * n:num_out]

        def _single(w1s, w2s, a_data, a_material, a_influx,
                    b_data, b_material, b_influx, e_data, transport_cost, a_is_dst):
            a_out, b_out, e_out = _impl(
                w1s, w2s,
                a_data[None], jnp.reshape(a_material, (1,)), jnp.reshape(a_influx, (1,)),
                b_data[None], jnp.reshape(b_material, (1,)), jnp.reshape(b_influx, (1,)),
                e_data[None], jnp.reshape(transport_cost, (1,)), a_is_dst)
            return a_out[0], b_out[0], e_out[0]

        # whole forward path (concat, pad, pallas_call, slice) fused under jit
        self._fwd_batch = jax.jit(_impl, static_argnums=(10,))
        self._fwd_single = jax.jit(_single, static_argnums=(10,))

    def _augment_branch(self, w1, b1, w2, b2):
        """Pad to TPU tiles and fuse biases: x carries a constant 1 in column num_in,
        the hidden layer carries a constant 1 in column num_in (the carrier)."""
        num_in, num_out = self.num_in, self.num_out
        K1P, K2P, OP = self.K1P, self.K2P, self.OP
        w1a = jnp.zeros((K1P, K2P), jnp.float32)
        w1a = w1a.at[:num_in, :num_in].set(w1)
        w1a = w1a.at[num_in, :num_in].set(b1)          # bias row (hit by constant-1 col of x)
        w1a = w1a.at[num_in, num_in].set(1.0)          # carrier: h[:, num_in] == 1
        w2a = jnp.zeros((K2P, OP), jnp.float32)
        w2a = w2a.at[:num_in, :num_out].set(w2)
        w2a = w2a.at[num_in, :num_out].set(b2)         # bias row (hit by carrier)
        return w1a, w2a

    # ------------------------------ public API -------------------------------
    def __call__(self, a_data, a_material, a_influx,
                 b_data, b_material, b_influx,
                 e_data, transport_cost, a_is_dst):
        """Single-edge forward (matches the PyTorch module)."""
        return self._fwd_single(self.w1_stacked, self.w2_stacked,
                                a_data, a_material, a_influx,
                                b_data, b_material, b_influx,
                                e_data, transport_cost, bool(a_is_dst))

    def forward_batch(self, a_data, a_material, a_influx,
                      b_data, b_material, b_influx,
                      e_data, transport_cost, a_is_dst):
        """Batched forward: leading E axis on every input, one branch flag per call."""
        return self._fwd_batch(self.w1_stacked, self.w2_stacked,
                               a_data, a_material, a_influx,
                               b_data, b_material, b_influx,
                               e_data, transport_cost, bool(a_is_dst))

    # ----------------------- pure-JAX references (sanity) --------------------
    def reference(self, a_data, a_material, a_influx,
                  b_data, b_material, b_influx,
                  e_data, transport_cost, a_is_dst):
        x = jnp.concatenate([
            jnp.reshape(transport_cost, (1,)),
            a_data, jnp.reshape(a_material, (1,)), jnp.reshape(a_influx, (1,)),
            b_data, jnp.reshape(b_material, (1,)), jnp.reshape(b_influx, (1,)),
            e_data,
        ], axis=0).astype(jnp.float32)
        w1, b1, w2, b2 = self.params_same if a_is_dst else self.params_diff
        h = jnp.maximum(x @ w1 + b1, 0.0)
        y = jnp.maximum(h @ w2 + b2, 0.0)
        n = self.n
        return y[n:2 * n], y[0:n], y[2 * n:]

    def reference_batch(self, a_data, a_material, a_influx,
                        b_data, b_material, b_influx,
                        e_data, transport_cost, a_is_dst):
        E = a_data.shape[0]
        x = jnp.concatenate([
            jnp.reshape(transport_cost, (E, 1)),
            a_data, jnp.reshape(a_material, (E, 1)), jnp.reshape(a_influx, (E, 1)),
            b_data, jnp.reshape(b_material, (E, 1)), jnp.reshape(b_influx, (E, 1)),
            e_data,
        ], axis=1).astype(jnp.float32)
        w1, b1, w2, b2 = self.params_same if a_is_dst else self.params_diff
        h = jnp.maximum(x @ w1 + b1, 0.0)
        y = jnp.maximum(h @ w2 + b2, 0.0)
        n = self.n
        return y[:, n:2 * n], y[:, 0:n], y[:, 2 * n:]


if __name__ == "__main__":
    node_features_count = 8
    edge_features_count = 8
    E = 16  # small edge batch for the batched path

    key = jax.random.PRNGKey(0)
    k_model, k_in = jax.random.split(key)
    model = PallasEdgeModel(node_features_count, edge_features_count, k_model)

    ks = jax.random.split(k_in, 8)
    a_data = jax.random.normal(ks[0], (node_features_count,), jnp.float32)
    a_material = jax.random.normal(ks[1], (), jnp.float32)
    a_influx = jax.random.normal(ks[2], (), jnp.float32)
    b_data = jax.random.normal(ks[3], (node_features_count,), jnp.float32)
    b_material = jax.random.normal(ks[4], (), jnp.float32)
    b_influx = jax.random.normal(ks[5], (), jnp.float32)
    e_data = jax.random.normal(ks[6], (edge_features_count,), jnp.float32)
    transport_cost = jax.random.normal(ks[7], (), jnp.float32)

    kb = jax.random.split(jax.random.PRNGKey(1), 8)
    A_data = jax.random.normal(kb[0], (E, node_features_count), jnp.float32)
    A_material = jax.random.normal(kb[1], (E,), jnp.float32)
    A_influx = jax.random.normal(kb[2], (E,), jnp.float32)
    B_data = jax.random.normal(kb[3], (E, node_features_count), jnp.float32)
    B_material = jax.random.normal(kb[4], (E,), jnp.float32)
    B_influx = jax.random.normal(kb[5], (E,), jnp.float32)
    E_data = jax.random.normal(kb[6], (E, edge_features_count), jnp.float32)
    T_cost = jax.random.normal(kb[7], (E,), jnp.float32)

    ok = True
    for a_is_dst in (True, False):   # exercise both weight branches
        # single-edge path (matches the PyTorch forward)
        out = model(a_data, a_material, a_influx,
                    b_data, b_material, b_influx,
                    e_data, transport_cost, a_is_dst)
        out = jax.block_until_ready(out)
        ref = model.reference(a_data, a_material, a_influx,
                              b_data, b_material, b_influx,
                              e_data, transport_cost, a_is_dst)
        for o, r in zip(out, ref):
            ok &= bool(np.allclose(np.asarray(o), np.asarray(r),
                                   rtol=1e-5, atol=1e-5))

        # batched path (weights VMEM-resident across the row grid)
        out_b = model.forward_batch(A_data, A_material, A_influx,
                                    B_data, B_material, B_influx,
                                    E_data, T_cost, a_is_dst)
        out_b = jax.block_until_ready(out_b)
        ref_b = model.reference_batch(A_data, A_material, A_influx,
                                      B_data, B_material, B_influx,
                                      E_data, T_cost, a_is_dst)
        for o, r in zip(out_b, ref_b):
            ok &= bool(np.allclose(np.asarray(o), np.asarray(r),
                                   rtol=1e-5, atol=1e-5))

    if ok:
        print("KERNEL_OK")
    else:
        raise SystemExit("MISMATCH between Pallas kernel and reference")
</pallas_src>

<mosaic_0001>
module attributes {stable_mosaic.version = 11 : i64} {
  func.func @_edge_mlp_kernel(%arg0: i32, %arg1: memref<1xi32, #tpu.memory_space<smem>>, %arg2: memref<8x32xf32, #tpu.memory_space<vmem>>, %arg3: memref<1x32x32xf32, #tpu.memory_space<vmem>>, %arg4: memref<1x32x128xf32, #tpu.memory_space<vmem>>, %arg5: memref<8x128xf32, #tpu.memory_space<vmem>>) attributes {dimension_semantics = [#tpu.dimension_semantics<parallel>], iteration_bounds = array<i64: 1>, scalar_prefetch = 1 : i64, scratch_operands = 0 : i64, tpu.core_type = #tpu.core_type<tc>, window_params = [{transform_indices = @transform_0, window_bounds = array<i64: 8, 32>}, {transform_indices = @transform_1, window_bounds = array<i64: 1, 32, 32>}, {transform_indices = @transform_2, window_bounds = array<i64: 1, 32, 128>}, {transform_indices = @transform_3, window_bounds = array<i64: 8, 128>}]} {
    %c0 = arith.constant 0 : index
    %c0_0 = arith.constant 0 : index
    %0 = vector.load %arg2[%c0, %c0_0] : memref<8x32xf32, #tpu.memory_space<vmem>>, vector<8x32xf32>
    %c0_1 = arith.constant 0 : index
    %c0_2 = arith.constant 0 : index
    %c0_3 = arith.constant 0 : index
    %1 = vector.load %arg3[%c0_1, %c0_2, %c0_3] : memref<1x32x32xf32, #tpu.memory_space<vmem>>, vector<1x32x32xf32>
    %2 = vector.shape_cast %1 : vector<1x32x32xf32> to vector<32x32xf32>
    %cst = arith.constant dense<0.000000e+00> : vector<8x32xf32>
    %3 = tpu.matmul %0, %2, %cst {dimension_numbers = #tpu.dot_dimension_numbers<[1], [0], [0], [1], [0, 0, 1, 1], [], []>} : vector<8x32xf32>, vector<32x32xf32>, vector<8x32xf32> -> vector<8x32xf32>
    %cst_4 = arith.constant 0.000000e+00 : f32
    %4 = vector.broadcast %cst_4 : f32 to vector<8x32xf32>
    %5 = arith.maximumf %3, %4 : vector<8x32xf32>
    %c0_5 = arith.constant 0 : index
    %c0_6 = arith.constant 0 : index
    %c0_7 = arith.constant 0 : index
    %6 = vector.load %arg4[%c0_5, %c0_6, %c0_7] : memref<1x32x128xf32, #tpu.memory_space<vmem>>, vector<1x32x128xf32>
    %7 = vector.shape_cast %6 : vector<1x32x128xf32> to vector<32x128xf32>
    %cst_8 = arith.constant dense<0.000000e+00> : vector<8x128xf32>
    %8 = tpu.matmul %5, %7, %cst_8 {dimension_numbers = #tpu.dot_dimension_numbers<[1], [0], [0], [1], [0, 0, 1, 1], [], []>} : vector<8x32xf32>, vector<32x128xf32>, vector<8x128xf32> -> vector<8x128xf32>
    %cst_9 = arith.constant 0.000000e+00 : f32
    %9 = vector.broadcast %cst_9 : f32 to vector<8x128xf32>
    %10 = arith.maximumf %8, %9 : vector<8x128xf32>
    %c0_10 = arith.constant 0 : index
    %c0_11 = arith.constant 0 : index
    %11 = vector.load %arg5[%c0_10, %c0_11] : memref<8x128xf32, #tpu.memory_space<vmem>>, vector<8x128xf32>
    tpu.vector_store %arg5[%c0_10, %c0_11], %10 {strides = array<i32>} : memref<8x128xf32, #tpu.memory_space<vmem>>, vector<8x128xf32>,
    return
  }
  func.func @transform_0(%arg0: i32, %arg1: memref<1xi32, #tpu.memory_space<smem>>) -> (i32, i32) {
    %c0_i32 = arith.constant 0 : i32
    %c0_i32_0 = arith.constant 0 : i32
    return %arg0, %c0_i32 : i32, i32
  }
  func.func @transform_1(%arg0: i32, %arg1: memref<1xi32, #tpu.memory_space<smem>>) -> (i32, i32, i32) {
    %c0 = arith.constant 0 : index
    %0 = memref.load %arg1[%c0] : memref<1xi32, #tpu.memory_space<smem>>
    %c0_i32 = arith.constant 0 : i32
    %c0_i32_0 = arith.constant 0 : i32
    %c0_i32_1 = arith.constant 0 : i32
    return %0, %c0_i32, %c0_i32_0 : i32, i32, i32
  }
  func.func @transform_2(%arg0: i32, %arg1: memref<1xi32, #tpu.memory_space<smem>>) -> (i32, i32, i32) {
    %c0 = arith.constant 0 : index
    %0 = memref.load %arg1[%c0] : memref<1xi32, #tpu.memory_space<smem>>
    %c0_i32 = arith.constant 0 : i32
    %c0_i32_0 = arith.constant 0 : i32
    %c0_i32_1 = arith.constant 0 : i32
    return %0, %c0_i32, %c0_i32_0 : i32, i32, i32
  }
  func.func @transform_3(%arg0: i32, %arg1: memref<1xi32, #tpu.memory_space<smem>>) -> (i32, i32) {
    %c0_i32 = arith.constant 0 : i32
    %c0_i32_0 = arith.constant 0 : i32
    return %arg0, %c0_i32 : i32, i32
  }
}

</mosaic_0001>

<llo_original>
// kernel: _single.1
$region0: #{_single.1}
  #allocation0 [shape = 'u32[]', space=smem, size = 0x4, offset = 0x4, fixed_abs, tag = 'smem constant byte address 0x4 - core index']
  #allocation1 [shape = 'u32[144,128]{1,0:T(1,128)}', space=vmem, size = 0x12000, scoped, tag = 'internal scratch']
  #allocation2 [shape = 's32[1]{0}', space=sflag, size = 0x4, scoped, tag = 'scoped memory for _single.1']
  #allocation3 [shape = 's32[1]{0:T(128)S(6)}', space=smem, size = 0x200, scoped, tag = 'prefetched SMEM operand 0']
  %s0 = inlined_call_operand.<no memory space> [shape: s32[1], index: 0, kind: input, shape index: {}]
  %s1 = inlined_call_operand.vmem [shape: f32[8,32], index: 1, kind: input, shape index: {}]
  %s2 = inlined_call_operand.vmem [shape: f32[2,32,32], index: 2, kind: input, shape index: {}]
  %s3 = inlined_call_operand.hbm [shape: f32[2,32,128], index: 3, kind: input, shape index: {}]
  %s4 = inlined_call_operand.vmem [shape: f32[8,128], index: 4, kind: output, shape index: {}]
  %s5 = sld [smem:[#allocation0]]
  $region26: #{_single.1} parent=0
    _
  %s7 = ssub.s32 1, %s5
  %s8 = scalar_select 0, %s7, %s5
  %9 = sst [smem:[#allocation3]] %s0
  $region1: #{_single.1} parent=0
    #allocation4 [shape = 'u8[16384]{0}', space=vmem, size = 0x4000, scoped, tag = 'input window, operand 3, single buffered']
    #allocation5 [shape = 's32[1]{0}', space=sflag, size = 0x4, scoped, tag = 'scoped memory for _single.1']
    %10 = vsyncpa [#allocation5], 0
    // Predicated region
    $region2: #{_single.1} parent=1 // pred_check
      _
    $region3: #{_single.1} parent=1 // pred_check_branch
      %12 = sbr.rel (0) target = $region5
    $region4: #{_single.1} parent=1 // pred_region
      _
    $region5: #{_single.1} parent=1 // pred_fallthru
      _
    // Predicated region
    $region6: #{_single.1} parent=1 // pred_check
      _
    $region7: #{_single.1} parent=1 // pred_check_branch
      %14 = sbr.rel (0) target = $region9
    $region8: #{_single.1} parent=1 // pred_region
      %s15 = sld [smem:[#allocation3]]
      %p16 = scmp.lt.s32.totalorder %s15, 1
      %s17 = scalar_select %p16, %s15, 1
      %s18 = smul.addr %s17, 4
      %s19 = smul.addr %s18, 8
      %s20 = scalar_lea.vmem %s2, %s19
      %s21 = sld [smem:[#allocation3]]
    $region9: #{_single.1} parent=1 // pred_fallthru
      _
    // Predicated region
    $region10: #{_single.1} parent=1 // pred_check
      _
    $region11: #{_single.1} parent=1 // pred_check_branch
      %23 = sbr.rel (0) target = $region13
    $region12: #{_single.1} parent=1 // pred_region
      %s24 = sld [smem:[#allocation3]]
      %s26 = ssub.s32 512, 512
      %27 = vsyncadd [#allocation5], %s26
      %s28 = smul.addr %s24, 4
      %s29 = smul.addr %s28, 128
      %s30 = scalar_lea.hbm %s3, %s29
      %s31 = sshll.u32 [#allocation4], 4
      %s32 = int_to_ptr.vmem [resolvable:$true] %s31
      %37 = dma.hbm_to_vmem [thread:$0]  %s30, 512, %s32, [#allocation5], 128, 128, 8
    $region13: #{_single.1} parent=1 // pred_fallthru
      _
    // Predicated region
    $region14: #{_single.1} parent=1 // pred_check
      _
    $region15: #{_single.1} parent=1 // pred_check_branch
      %39 = sbr.rel (0) target = $region17
    $region16: #{_single.1} parent=1 // pred_region
      %40 = dma.done [#allocation5], 512
    $region17: #{_single.1} parent=1 // pred_fallthru
      _
    %s41 = sld [smem:[#allocation3]]
    %p42 = scmp.lt.s32.totalorder %s41, 1
    %s43 = scalar_select %p42, %s41, 1
    %s44 = smul.addr %s43, 4
    %s45 = smul.addr %s44, 8
    %s46 = scalar_lea.vmem %s2, %s45
    %s47 = sld [smem:[#allocation3]]
    %p48 = scmp.lt.s32.totalorder %s47, 1
    %s49 = scalar_select %p48, %s47, 1
    %s50 = smul.addr %s49, 4
    %s51 = smul.addr %s50, 8
    %s52 = scalar_lea.vmem %s2, %s51
    %s53 = sld [smem:[#allocation3]]
    %s54 = sld [smem:[#allocation3]]
    %v55 = vld [vmem:[%s1] sm:$0xff]
    %v56 = vld [vmem:[%s52] sm:$0xff]
    %v57 = vld [vmem:[%s52 + $0x8] sm:$0xff]
    %v58 = vld [vmem:[%s52 + $0x10] sm:$0xff]
    %v59 = vld [vmem:[%s52 + $0x18] sm:$0xff]
    %vm60 = vcmask 261120
    %v62 = vsel %vm60, %v55, 0
    %64 = vmatprep.subr.mxu0 0.0
    %65 = vmatpush1.msra.mxu0 %v56
    %66 = vmatprep.subr.mxu0 0.0
    %67 = vmatpush1.msra.mxu0 %v57
    %68 = vmatprep.subr.mxu0 0.0
    %69 = vmatpush1.msra.mxu0 %v58
    %70 = vmatprep.subr.mxu0 0.0
    %71 = vmatpush1.msra.mxu0 %v59
    %72 = vmatprep.subr.mxu0 0.0
    %73 = vmatpush1.msra.mxu0 0.0
    %74 = vmatprep.subr.mxu0 0.0
    %75 = vmatpush1.msra.mxu0 0.0
    %76 = vmatprep.subr.mxu0 0.0
    %77 = vmatpush1.msra.mxu0 0.0
    %78 = vmatprep.subr.mxu0 0.0
    %79 = vmatpush1.msra.mxu0 0.0
    %80 = vmatprep.subr.mxu0 0.0
    %81 = vmatpush1.msra.mxu0 0.0
    %82 = vmatprep.subr.mxu0 0.0
    %83 = vmatpush1.msra.mxu0 0.0
    %84 = vmatprep.subr.mxu0 0.0
    %85 = vmatpush1.msra.mxu0 0.0
    %86 = vmatprep.subr.mxu0 0.0
    %87 = vmatpush1.msra.mxu0 0.0
    %88 = vmatprep.subr.mxu0 0.0
    %89 = vmatpush1.msra.mxu0 0.0
    %90 = vmatprep.subr.mxu0 0.0
    %91 = vmatpush1.msra.mxu0 0.0
    %92 = vmatprep.subr.mxu0 0.0
    %93 = vmatpush1.msra.mxu0 0.0
    %94 = vmatprep.subr.mxu0 0.0
    %95 = vmatpush1.msra.mxu0 0.0
    %96 = vmatprep.subr.mxu0 0.0
    %97 = vmatpush1.msra.mxu0 0.0
    %98 = vmatprep.subr.mxu0 0.0
    %99 = vmatpush1.msra.mxu0 0.0
    %100 = vmatprep.subr.mxu0 0.0
    %101 = vmatpush1.msra.mxu0 0.0
    %102 = vmatprep.subr.mxu0 0.0
    %103 = vmatpush1.msra.mxu0 0.0
    %104 = vmatprep.subr.mxu0 0.0
    %105 = vmatpush1.msra.mxu0 0.0
    %106 = vmatprep.subr.mxu0 0.0
    %107 = vmatpush1.msra.mxu0 0.0
    %108 = vmatprep.subr.mxu0 0.0
    %109 = vmatpush1.msra.mxu0 0.0
    %110 = vmatprep.subr.mxu0 0.0
    %111 = vmatpush1.msra.mxu0 0.0
    %112 = vmatprep.subr.mxu0 0.0
    %113 = vmatpush1.msra.mxu0 0.0
    %114 = vmatprep.subr.mxu0 0.0
    %115 = vmatpush1.msra.mxu0 0.0
    %116 = vmatprep.subr.mxu0 0.0
    %117 = vmatpush1.msra.mxu0 0.0
    %118 = vmatprep.subr.mxu0 0.0
    %119 = vmatpush1.msra.mxu0 0.0
    %120 = vmatprep.subr.mxu0 0.0
    %121 = vmatpush1.msra.mxu0 0.0
    %122 = vmatprep.subr.mxu0 0.0
    %123 = vmatpush1.msra.mxu0 0.0
    %124 = vmatprep.subr.mxu0 0.0
    %125 = vmatpush1.msra.mxu0 0.0
    %126 = vmatprep.subr.mxu0 0.0
    %127 = vmatpush1.msra.mxu0 0.0
    %128 = vmatprep.mubr.f32.mxu0 0.0
    %129 = vmatmul.mubr.f32.gmra.mrb[0].mxu0 %v62
    %v130 = vpop.f32.mrb[0].mxu0
    %v131 = vadd.f32 0.0, %v130
    %v132 = vpop.f32.mrb[0].mxu0
    %133 = vdwg.mxu0
    %v134 = vmax.f32 %v131, 0.0
    %v135 = vld [vmem:[#allocation4] sm:$0xff]
    %v136 = vld [vmem:[#allocation4 + $0x8] sm:$0xff]
    %v137 = vld [vmem:[#allocation4 + $0x10] sm:$0xff]
    %v138 = vld [vmem:[#allocation4 + $0x18] sm:$0xff]
    %v140 = vsel %vm60, %v134, 0
    %142 = vmatprep.subr.mxu0 0.0
    %143 = vmatpush1.msra.mxu0 %v135
    %144 = vmatprep.subr.mxu0 0.0
    %145 = vmatpush1.msra.mxu0 %v136
    %146 = vmatprep.subr.mxu0 0.0
    %147 = vmatpush1.msra.mxu0 %v137
    %148 = vmatprep.subr.mxu0 0.0
    %149 = vmatpush1.msra.mxu0 %v138
    %150 = vmatprep.subr.mxu0 0.0
    %151 = vmatpush1.msra.mxu0 0.0
    %152 = vmatprep.subr.mxu0 0.0
    %153 = vmatpush1.msra.mxu0 0.0
    %154 = vmatprep.subr.mxu0 0.0
    %155 = vmatpush1.msra.mxu0 0.0
    %156 = vmatprep.subr.mxu0 0.0
    %157 = vmatpush1.msra.mxu0 0.0
    %158 = vmatprep.subr.mxu0 0.0
    %159 = vmatpush1.msra.mxu0 0.0
    %160 = vmatprep.subr.mxu0 0.0
    %161 = vmatpush1.msra.mxu0 0.0
    %162 = vmatprep.subr.mxu0 0.0
    %163 = vmatpush1.msra.mxu0 0.0
    %164 = vmatprep.subr.mxu0 0.0
    %165 = vmatpush1.msra.mxu0 0.0
    %166 = vmatprep.subr.mxu0 0.0
    %167 = vmatpush1.msra.mxu0 0.0
    %168 = vmatprep.subr.mxu0 0.0
    %169 = vmatpush1.msra.mxu0 0.0
    %170 = vmatprep.subr.mxu0 0.0
    %171 = vmatpush1.msra.mxu0 0.0
    %172 = vmatprep.subr.mxu0 0.0
    %173 = vmatpush1.msra.mxu0 0.0
    %174 = vmatprep.subr.mxu0 0.0
    %175 = vmatpush1.msra.mxu0 0.0
    %176 = vmatprep.subr.mxu0 0.0
    %177 = vmatpush1.msra.mxu0 0.0
    %178 = vmatprep.subr.mxu0 0.0
    %179 = vmatpush1.msra.mxu0 0.0
    %180 = vmatprep.subr.mxu0 0.0
    %181 = vmatpush1.msra.mxu0 0.0
    %182 = vmatprep.subr.mxu0 0.0
    %183 = vmatpush1.msra.mxu0 0.0
    %184 = vmatprep.subr.mxu0 0.0
    %185 = vmatpush1.msra.mxu0 0.0
    %186 = vmatprep.subr.mxu0 0.0
    %187 = vmatpush1.msra.mxu0 0.0
    %188 = vmatprep.subr.mxu0 0.0
    %189 = vmatpush1.msra.mxu0 0.0
    %190 = vmatprep.subr.mxu0 0.0
    %191 = vmatpush1.msra.mxu0 0.0
    %192 = vmatprep.subr.mxu0 0.0
    %193 = vmatpush1.msra.mxu0 0.0
    %194 = vmatprep.subr.mxu0 0.0
    %195 = vmatpush1.msra.mxu0 0.0
    %196 = vmatprep.subr.mxu0 0.0
    %197 = vmatpush1.msra.mxu0 0.0
    %198 = vmatprep.subr.mxu0 0.0
    %199 = vmatpush1.msra.mxu0 0.0
    %200 = vmatprep.subr.mxu0 0.0
    %201 = vmatpush1.msra.mxu0 0.0
    %202 = vmatprep.subr.mxu0 0.0
    %203 = vmatpush1.msra.mxu0 0.0
    %204 = vmatprep.subr.mxu0 0.0
    %205 = vmatpush1.msra.mxu0 0.0
    %206 = vmatprep.mubr.f32.mxu0 0.0
    %207 = vmatmul.mubr.f32.gmra.mrb[0].mxu0 %v140
    %v208 = vpop.f32.mrb[0].mxu0
    %v209 = vadd.f32 0.0, %v208
    %v210 = vpop.f32.mrb[0].mxu0
    %211 = vdwg.mxu0
    %v212 = vmax.f32 %v209, 0.0
    %213 = vst [vmem:[%s4] sm:$0xff] %v212
    // Predicated region
    $region18: #{_single.1} parent=1 // pred_check
      _
    $region19: #{_single.1} parent=1 // pred_check_branch
      %215 = sbr.rel (0) target = $region21
    $region20: #{_single.1} parent=1 // pred_region
      _
    $region21: #{_single.1} parent=1 // pred_fallthru
      _
    // Predicated region
    $region22: #{_single.1} parent=1 // pred_check
      _
    $region23: #{_single.1} parent=1 // pred_check_branch
      %217 = sbr.rel (0) target = $region25
    $region24: #{_single.1} parent=1 // pred_region
      _
    $region25: #{_single.1} parent=1 // pred_fallthru
      _
    %218 = vsyncpa [#allocation5], 1

</llo_original>
